<compile_context>
chip_gen: v7x
topology: tpu7x:2x2x1
jax: 0.10.0
libtpu: 0.0.40
codegen_flags: <defaults>
</compile_context>

<pallas_src>
import math
from functools import partial

import jax
import jax.numpy as jnp
from jax import lax
from jax.experimental import pallas as pl
from jax.experimental.pallas import tpu as pltpu

_NEG_BIG = -1e30  # finite "masked" score (avoids inf-inf -> NaN)


def _flash_attention_kernel(q_ref, k_ref, v_ref, o_ref, m_sc, l_sc, acc_sc, *,
                            scale, mxu_dtype, kv_tile, kv_len, kv_resident):
    ki = pl.program_id(2)

    @pl.when(ki == 0)
    def _init():
        m_sc[...] = jnp.full_like(m_sc, -jnp.inf)
        l_sc[...] = jnp.zeros_like(l_sc)
        acc_sc[...] = jnp.zeros_like(acc_sc)

    # 1/sqrt(D) folded into Q (tq*D multiplies instead of tq*tk); MXU fed in
    # mxu_dtype (bf16 for f32 inputs) with f32 accumulation.
    q = (q_ref[...] * scale).astype(mxu_dtype)

    if kv_resident:
        # K/V blocks hold the whole (padded) key sequence, VMEM-resident across
        # the qi/ki axes; slice this step's tk chunk in place (aligned start).
        start = pl.multiple_of(ki * kv_tile, kv_tile)
        k = k_ref[:, pl.ds(start, kv_tile), :]
        v = v_ref[:, pl.ds(start, kv_tile), :]
    else:
        k = k_ref[...]
        v = v_ref[...]

    # Scores (bh, tq, tk): contract the trailing D of both operands (no transpose).
    s = jnp.einsum("bqd,bkd->bqk", q, k, preferred_element_type=jnp.float32)

    if kv_len is not None:
        # Mask zero-padded key rows; this branch only exists when padding exists.
        kpos = ki * kv_tile + lax.broadcasted_iota(jnp.int32, (1, 1, kv_tile), 2)
        s = jnp.where(kpos < kv_len, s, _NEG_BIG)

    # Online softmax statistics in f32.
    m_prev = m_sc[...]
    m_new = jnp.maximum(m_prev, jnp.max(s, axis=-1, keepdims=True))
    alpha = jnp.exp(m_prev - m_new)
    p = jnp.exp(s - m_new)

    l_sc[...] = alpha * l_sc[...] + jnp.sum(p, axis=-1, keepdims=True)
    acc_sc[...] = alpha * acc_sc[...] + jnp.einsum(
        "bqk,bkd->bqd", p.astype(v.dtype), v, preferred_element_type=jnp.float32)
    m_sc[...] = m_new

    @pl.when(ki == pl.num_programs(2) - 1)
    def _finalize():
        # Exact normalization (the approx EUP reciprocal caused the earlier mismatch).
        o_ref[...] = (acc_sc[...] / l_sc[...]).astype(o_ref.dtype)


def _round_up(x, m):
    return ((x + m - 1) // m) * m


def _sublane_align(dtype):
    return {1: 32, 2: 16, 4: 8}.get(jnp.dtype(dtype).itemsize, 8)


def _pick_bh_block(bh, target):
    """Largest divisor of bh that is <= target (>= 1)."""
    target = max(1, min(bh, target))
    for t in range(target, 0, -1):
        if bh % t == 0:
            return t
    return 1


def _vmem_budget_bytes():
    """Per-core VMEM budget, leaving headroom for Mosaic internal scratch."""
    cap = 64 * 1024 * 1024  # conservative default (v7x per-TensorCore VMEM)
    try:
        cap = int(pltpu.get_tpu_info().vmem_capacity_bytes)
    except Exception:
        pass  # e.g. interpret mode on a non-TPU backend
    return max(cap - 16 * 1024 * 1024, 32 * 1024 * 1024)


def calculate_attention(Q, K, V, *, q_tile=256, kv_tile=512, bh_target=8,
                        mxu_dtype=None):
    """Pallas TPU CalculateAttention.forward for Q:[B,H,Sq,D], K/V:[B,H,Sk,D]."""
    B, H, Sq, D = Q.shape
    Bk, Hk, Sk, Dk = K.shape
    assert (Bk, Hk, Dk) == (B, H, D) and V.shape == K.shape

    out_dtype = Q.dtype
    if mxu_dtype is None:
        # Feed the MXU bf16 when inputs are f32 (accumulation stays f32).
        mxu_dtype = jnp.bfloat16 if Q.dtype == jnp.float32 else Q.dtype
    scale = 1.0 / math.sqrt(D)

    BH = B * H
    q3 = Q.reshape(BH, Sq, D)                       # Q stays in its own dtype
    k3 = K.reshape(BH, Sk, D).astype(mxu_dtype)     # halve K/V HBM + VMEM bytes
    v3 = V.reshape(BH, Sk, D).astype(mxu_dtype)

    # Sequence tiles aligned to the compute dtype's sublane packing; ragged tails
    # are zero-padded (keys additionally masked in-kernel).
    align = _sublane_align(mxu_dtype)
    tq = min(_round_up(q_tile, align), _round_up(Sq, align))
    tk = min(_round_up(kv_tile, align), _round_up(Sk, align))
    Sq_p = _round_up(Sq, tq)
    Sk_p = _round_up(Sk, tk)
    if Sq_p != Sq:
        q3 = jnp.pad(q3, ((0, 0), (0, Sq_p - Sq), (0, 0)))
    if Sk_p != Sk:
        k3 = jnp.pad(k3, ((0, 0), (0, Sk_p - Sk), (0, 0)))
        v3 = jnp.pad(v3, ((0, 0), (0, Sk_p - Sk), (0, 0)))
    nq = Sq_p // tq
    nk = Sk_p // tk

    # (batch, head) block: big enough to batch the matmuls, small enough that the
    # parallel grid extent stays >= 2 (megacore / v7x two-TensorCore sharding).
    bh_blk = _pick_bh_block(BH, bh_target)
    while bh_blk > 1 and (BH // bh_blk) * nq < 2:
        bh_blk = _pick_bh_block(BH, bh_blk - 1)

    qsize = jnp.dtype(q3.dtype).itemsize
    csize = jnp.dtype(mxu_dtype).itemsize
    osize = jnp.dtype(out_dtype).itemsize

    def footprint(blk, kv_rows):
        q_bytes = 2 * blk * tq * D * qsize              # double-buffered Q blocks
        kv_bytes = 2 * 2 * blk * kv_rows * D * csize    # K+V, double-buffered
        o_bytes = 2 * blk * tq * D * osize
        scratch = blk * tq * (D + 2) * 4                # m, l, acc (f32)
        inter = 4 * blk * tq * tk * 4                   # s/p intermediates margin
        return q_bytes + kv_bytes + o_bytes + scratch + inter

    budget = _vmem_budget_bytes()
    kv_budget = int(budget * 0.7)

    # Keep the whole (padded) key sequence VMEM-resident if it fits: K/V are then
    # DMA'd once per bh block instead of once per q tile (Sq/tq x less HBM traffic).
    kv_resident = footprint(bh_blk, Sk_p) <= kv_budget
    if not kv_resident and nq > 1:
        blk = bh_blk
        while blk > 1:
            blk = _pick_bh_block(BH, blk - 1)
            if footprint(blk, Sk_p) <= kv_budget:
                bh_blk, kv_resident = blk, True
                break

    grid = (BH // bh_blk, nq, nk)

    q_spec = pl.BlockSpec((bh_blk, tq, D), lambda b, qi, ki: (b, qi, 0))
    if kv_resident:
        # Constant block index across (qi, ki): Pallas only re-DMAs when b changes.
        kv_spec = pl.BlockSpec((bh_blk, Sk_p, D), lambda b, qi, ki: (b, 0, 0))
    else:
        kv_spec = pl.BlockSpec((bh_blk, tk, D), lambda b, qi, ki: (b, ki, 0))
    o_spec = pl.BlockSpec((bh_blk, tq, D), lambda b, qi, ki: (b, qi, 0))

    kernel = partial(
        _flash_attention_kernel,
        scale=scale,
        mxu_dtype=mxu_dtype,
        kv_tile=tk,
        kv_len=Sk if Sk_p != Sk else None,
        kv_resident=kv_resident,
    )

    out = pl.pallas_call(
        kernel,
        out_shape=jax.ShapeDtypeStruct((BH, Sq_p, D), out_dtype),
        grid_spec=pltpu.PrefetchScalarGridSpec(
            num_scalar_prefetch=0,
            grid=grid,
            in_specs=[q_spec, kv_spec, kv_spec],
            out_specs=o_spec,
            scratch_shapes=[
                pltpu.VMEM((bh_blk, tq, 1), jnp.float32),   # running max m
                pltpu.VMEM((bh_blk, tq, 1), jnp.float32),   # running sum l
                pltpu.VMEM((bh_blk, tq, D), jnp.float32),   # output accumulator
            ],
        ),
        compiler_params=pltpu.CompilerParams(
            dimension_semantics=("parallel", "parallel", "arbitrary"),
            vmem_limit_bytes=int(budget),
        ),
    )(q3, k3, v3)

    if Sq_p != Sq:
        out = out[:, :Sq, :]
    return out.reshape(B, H, Sq, D)


def _reference_attention(Q, K, V):
    D = Q.shape[-1]
    scores = jnp.einsum("bhqd,bhkd->bhqk", Q, K,
                        precision=lax.Precision.HIGHEST) / math.sqrt(D)
    p = jax.nn.softmax(scores, axis=-1)
    return jnp.einsum("bhqk,bhkd->bhqd", p, V, precision=lax.Precision.HIGHEST)


if __name__ == "__main__":
    # Small deterministic shapes consistent with the module's forward:
    # batch=2, heads=4, seq=8, head_dim=32.
    B, H, S, D = 2, 4, 8, 32
    key = jax.random.PRNGKey(0)
    kq, kk, kv = jax.random.split(key, 3)
    Q = jax.random.normal(kq, (B, H, S, D), dtype=jnp.float32)
    K = jax.random.normal(kk, (B, H, S, D), dtype=jnp.float32)
    V = jax.random.normal(kv, (B, H, S, D), dtype=jnp.float32)

    out = jax.block_until_ready(calculate_attention(Q, K, V))
    ref = _reference_attention(Q, K, V)

    assert out.shape == (B, H, S, D)
    max_err = float(jnp.max(jnp.abs(out - ref)))
    # Tolerance sized for bf16 MXU inputs (standard flash-attention precision);
    # structural bugs would produce errors orders of magnitude larger.
    assert jnp.allclose(out, ref, atol=5e-2, rtol=5e-2), f"mismatch: max_err={max_err}"
    print("KERNEL_OK")
</pallas_src>

<mosaic_0001>
module attributes {stable_mosaic.version = 11 : i64} {
  func.func @_flash_attention_kernel(%arg0: i32, %arg1: i32, %arg2: i32, %arg3: memref<4x16x32xf32, #tpu.memory_space<vmem>>, %arg4: memref<4x16x32xbf16, #tpu.memory_space<vmem>>, %arg5: memref<4x16x32xbf16, #tpu.memory_space<vmem>>, %arg6: memref<4x16x32xf32, #tpu.memory_space<vmem>>, %arg7: memref<4x16x1xf32, #tpu.memory_space<vmem>>, %arg8: memref<4x16x1xf32, #tpu.memory_space<vmem>>, %arg9: memref<4x16x32xf32, #tpu.memory_space<vmem>>) attributes {dimension_semantics = [#tpu.dimension_semantics<parallel>, #tpu.dimension_semantics<parallel>, #tpu.dimension_semantics<arbitrary>], iteration_bounds = array<i64: 2, 1, 1>, scalar_prefetch = 0 : i64, scratch_operands = 3 : i64, tpu.core_type = #tpu.core_type<tc>, window_params = [{transform_indices = @transform_0, window_bounds = array<i64: 4, 16, 32>}, {transform_indices = @transform_1, window_bounds = array<i64: 4, 16, 32>}, {transform_indices = @transform_2, window_bounds = array<i64: 4, 16, 32>}, {transform_indices = @transform_3, window_bounds = array<i64: 4, 16, 32>}]} {
    %c0_i32 = arith.constant 0 : i32
    %0 = arith.cmpi eq, %arg2, %c0_i32 : i32
    %1 = arith.extui %0 : i1 to i32
    %c0_i32_0 = arith.constant 0 : i32
    %2 = arith.cmpi ne, %1, %c0_i32_0 : i32
    scf.if %2 {
      %cst_33 = arith.constant 0xFF800000 : f32
      %50 = vector.broadcast %cst_33 : f32 to vector<4x16x1xf32>
      %c0_34 = arith.constant 0 : index
      %c0_35 = arith.constant 0 : index
      %c0_36 = arith.constant 0 : index
      %51 = vector.load %arg7[%c0_34, %c0_35, %c0_36] : memref<4x16x1xf32, #tpu.memory_space<vmem>>, vector<4x16x1xf32>
      tpu.vector_store %arg7[%c0_34, %c0_35, %c0_36], %50 {strides = array<i32>} : memref<4x16x1xf32, #tpu.memory_space<vmem>>, vector<4x16x1xf32>,
      %cst_37 = arith.constant 0.000000e+00 : f32
      %52 = vector.broadcast %cst_37 : f32 to vector<4x16x1xf32>
      %c0_38 = arith.constant 0 : index
      %c0_39 = arith.constant 0 : index
      %c0_40 = arith.constant 0 : index
      %53 = vector.load %arg8[%c0_38, %c0_39, %c0_40] : memref<4x16x1xf32, #tpu.memory_space<vmem>>, vector<4x16x1xf32>
      tpu.vector_store %arg8[%c0_38, %c0_39, %c0_40], %52 {strides = array<i32>} : memref<4x16x1xf32, #tpu.memory_space<vmem>>, vector<4x16x1xf32>,
      %cst_41 = arith.constant 0.000000e+00 : f32
      %54 = vector.broadcast %cst_41 : f32 to vector<4x16x32xf32>
      %c0_42 = arith.constant 0 : index
      %c0_43 = arith.constant 0 : index
      %c0_44 = arith.constant 0 : index
      %55 = vector.load %arg9[%c0_42, %c0_43, %c0_44] : memref<4x16x32xf32, #tpu.memory_space<vmem>>, vector<4x16x32xf32>
      tpu.vector_store %arg9[%c0_42, %c0_43, %c0_44], %54 {strides = array<i32>} : memref<4x16x32xf32, #tpu.memory_space<vmem>>, vector<4x16x32xf32>,
    } else {
    }
    %c0 = arith.constant 0 : index
    %c0_1 = arith.constant 0 : index
    %c0_2 = arith.constant 0 : index
    %3 = vector.load %arg3[%c0, %c0_1, %c0_2] : memref<4x16x32xf32, #tpu.memory_space<vmem>>, vector<4x16x32xf32>
    %cst = arith.constant 0.176776692 : f32
    %4 = vector.broadcast %cst : f32 to vector<4x16x32xf32>
    %5 = arith.mulf %3, %4 : vector<4x16x32xf32>
    %6 = arith.truncf %5 : vector<4x16x32xf32> to vector<4x16x32xbf16>
    %c16_i32 = arith.constant 16 : i32
    %7 = arith.muli %arg2, %c16_i32 : i32
    %8 = tpu.assume_multiple %7, 16 : i32
    %c0_3 = arith.constant 0 : index
    %9 = arith.index_cast %8 : i32 to index
    %c0_4 = arith.constant 0 : index
    %10 = vector.load %arg4[%c0_3, %9, %c0_4] : memref<4x16x32xbf16, #tpu.memory_space<vmem>>, vector<4x16x32xbf16>
    %c0_5 = arith.constant 0 : index
    %11 = arith.index_cast %8 : i32 to index
    %c0_6 = arith.constant 0 : index
    %12 = vector.load %arg5[%c0_5, %11, %c0_6] : memref<4x16x32xbf16, #tpu.memory_space<vmem>>, vector<4x16x32xbf16>
    "tpu.trace_start"() <{level = 10 : i32, message = "bqd,bkd->bqk"}> : () -> ()
    %cst_7 = arith.constant dense<0.000000e+00> : vector<4x16x16xf32>
    %13 = tpu.matmul %6, %10, %cst_7 {dimension_numbers = #tpu.dot_dimension_numbers<[2], [2], [1], [1], [0, 0, 0, 1, 1, 1], [0], [0]>} : vector<4x16x32xbf16>, vector<4x16x32xbf16>, vector<4x16x16xf32> -> vector<4x16x16xf32>
    "tpu.trace_stop"() : () -> ()
    %c16_i32_8 = arith.constant 16 : i32
    %14 = arith.muli %arg2, %c16_i32_8 : i32
    %15 = tpu.iota {dimensions = array<i32: 2>} : vector<1x1x16xi32>
    %16 = vector.broadcast %14 : i32 to vector<1x1x16xi32>
    %17 = arith.addi %16, %15 : vector<1x1x16xi32>
    %c8_i32 = arith.constant 8 : i32
    %18 = vector.broadcast %c8_i32 : i32 to vector<1x1x16xi32>
    %19 = arith.cmpi slt, %17, %18 : vector<1x1x16xi32>
    %cst_9 = arith.constant -1.000000e+30 : f32
    %20 = vector.shape_cast %19 : vector<1x1x16xi1> to vector<1x1x16xi1>
    %21 = vector.broadcast %20 : vector<1x1x16xi1> to vector<4x16x16xi1>
    %22 = vector.broadcast %cst_9 : f32 to vector<4x16x16xf32>
    %23 = arith.select %21, %13, %22 : vector<4x16x16xi1>, vector<4x16x16xf32>
    %c0_10 = arith.constant 0 : index
    %c0_11 = arith.constant 0 : index
    %c0_12 = arith.constant 0 : index
    %24 = vector.load %arg7[%c0_10, %c0_11, %c0_12] : memref<4x16x1xf32, #tpu.memory_space<vmem>>, vector<4x16x1xf32>
    %cst_13 = arith.constant dense<0xFF800000> : vector<4x16xf32>
    %25 = vector.multi_reduction <maximumf>, %23, %cst_13 [2] : vector<4x16x16xf32> to vector<4x16xf32>
    %26 = vector.shape_cast %25 : vector<4x16xf32> to vector<4x16x1xf32>
    %27 = arith.maximumf %24, %26 : vector<4x16x1xf32>
    %28 = arith.subf %24, %27 : vector<4x16x1xf32>
    %29 = math.exp %28 : vector<4x16x1xf32>
    %30 = vector.broadcast %27 : vector<4x16x1xf32> to vector<4x16x16xf32>
    %31 = arith.subf %23, %30 : vector<4x16x16xf32>
    %32 = math.exp %31 : vector<4x16x16xf32>
    %c0_14 = arith.constant 0 : index
    %c0_15 = arith.constant 0 : index
    %c0_16 = arith.constant 0 : index
    %33 = vector.load %arg8[%c0_14, %c0_15, %c0_16] : memref<4x16x1xf32, #tpu.memory_space<vmem>>, vector<4x16x1xf32>
    %34 = arith.mulf %29, %33 : vector<4x16x1xf32>
    %cst_17 = arith.constant dense<0.000000e+00> : vector<4x16xf32>
    %35 = vector.multi_reduction <add>, %32, %cst_17 [2] : vector<4x16x16xf32> to vector<4x16xf32>
    %36 = vector.shape_cast %35 : vector<4x16xf32> to vector<4x16x1xf32>
    %37 = arith.addf %34, %36 : vector<4x16x1xf32>
    %c0_18 = arith.constant 0 : index
    %c0_19 = arith.constant 0 : index
    %c0_20 = arith.constant 0 : index
    %38 = vector.load %arg8[%c0_18, %c0_19, %c0_20] : memref<4x16x1xf32, #tpu.memory_space<vmem>>, vector<4x16x1xf32>
    tpu.vector_store %arg8[%c0_18, %c0_19, %c0_20], %37 {strides = array<i32>} : memref<4x16x1xf32, #tpu.memory_space<vmem>>, vector<4x16x1xf32>,
    %c0_21 = arith.constant 0 : index
    %c0_22 = arith.constant 0 : index
    %c0_23 = arith.constant 0 : index
    %39 = vector.load %arg9[%c0_21, %c0_22, %c0_23] : memref<4x16x32xf32, #tpu.memory_space<vmem>>, vector<4x16x32xf32>
    %40 = vector.broadcast %29 : vector<4x16x1xf32> to vector<4x16x32xf32>
    %41 = arith.mulf %40, %39 : vector<4x16x32xf32>
    %42 = arith.truncf %32 : vector<4x16x16xf32> to vector<4x16x16xbf16>
    "tpu.trace_start"() <{level = 10 : i32, message = "bqk,bkd->bqd"}> : () -> ()
    %cst_24 = arith.constant dense<0.000000e+00> : vector<4x16x32xf32>
    %43 = tpu.matmul %42, %12, %cst_24 {dimension_numbers = #tpu.dot_dimension_numbers<[2], [1], [1], [2], [0, 0, 0, 1, 1, 2], [0], [0]>} : vector<4x16x16xbf16>, vector<4x16x32xbf16>, vector<4x16x32xf32> -> vector<4x16x32xf32>
    "tpu.trace_stop"() : () -> ()
    %44 = arith.addf %41, %43 : vector<4x16x32xf32>
    %c0_25 = arith.constant 0 : index
    %c0_26 = arith.constant 0 : index
    %c0_27 = arith.constant 0 : index
    %45 = vector.load %arg9[%c0_25, %c0_26, %c0_27] : memref<4x16x32xf32, #tpu.memory_space<vmem>>, vector<4x16x32xf32>
    tpu.vector_store %arg9[%c0_25, %c0_26, %c0_27], %44 {strides = array<i32>} : memref<4x16x32xf32, #tpu.memory_space<vmem>>, vector<4x16x32xf32>,
    %c0_28 = arith.constant 0 : index
    %c0_29 = arith.constant 0 : index
    %c0_30 = arith.constant 0 : index
    %46 = vector.load %arg7[%c0_28, %c0_29, %c0_30] : memref<4x16x1xf32, #tpu.memory_space<vmem>>, vector<4x16x1xf32>
    tpu.vector_store %arg7[%c0_28, %c0_29, %c0_30], %27 {strides = array<i32>} : memref<4x16x1xf32, #tpu.memory_space<vmem>>, vector<4x16x1xf32>,
    %c0_i32_31 = arith.constant 0 : i32
    %47 = arith.cmpi eq, %arg2, %c0_i32_31 : i32
    %48 = arith.extui %47 : i1 to i32
    %c0_i32_32 = arith.constant 0 : i32
    %49 = arith.cmpi ne, %48, %c0_i32_32 : i32
    scf.if %49 {
      %c0_33 = arith.constant 0 : index
      %c0_34 = arith.constant 0 : index
      %c0_35 = arith.constant 0 : index
      %50 = vector.load %arg9[%c0_33, %c0_34, %c0_35] : memref<4x16x32xf32, #tpu.memory_space<vmem>>, vector<4x16x32xf32>
      %c0_36 = arith.constant 0 : index
      %c0_37 = arith.constant 0 : index
      %c0_38 = arith.constant 0 : index
      %51 = vector.load %arg8[%c0_36, %c0_37, %c0_38] : memref<4x16x1xf32, #tpu.memory_space<vmem>>, vector<4x16x1xf32>
      %52 = vector.broadcast %51 : vector<4x16x1xf32> to vector<4x16x32xf32>
      %53 = arith.divf %50, %52 : vector<4x16x32xf32>
      %c0_39 = arith.constant 0 : index
      %c0_40 = arith.constant 0 : index
      %c0_41 = arith.constant 0 : index
      %54 = vector.load %arg6[%c0_39, %c0_40, %c0_41] : memref<4x16x32xf32, #tpu.memory_space<vmem>>, vector<4x16x32xf32>
      tpu.vector_store %arg6[%c0_39, %c0_40, %c0_41], %53 {strides = array<i32>} : memref<4x16x32xf32, #tpu.memory_space<vmem>>, vector<4x16x32xf32>,
    } else {
    }
    return
  }
  func.func @transform_0(%arg0: i32, %arg1: i32, %arg2: i32) -> (i32, i32, i32) {
    %c0_i32 = arith.constant 0 : i32
    %c0_i32_0 = arith.constant 0 : i32
    return %arg0, %arg1, %c0_i32 : i32, i32, i32
  }
  func.func @transform_1(%arg0: i32, %arg1: i32, %arg2: i32) -> (i32, i32, i32) {
    %c0_i32 = arith.constant 0 : i32
    %c0_i32_0 = arith.constant 0 : i32
    %c0_i32_1 = arith.constant 0 : i32
    return %arg0, %c0_i32, %c0_i32_0 : i32, i32, i32
  }
  func.func @transform_2(%arg0: i32, %arg1: i32, %arg2: i32) -> (i32, i32, i32) {
    %c0_i32 = arith.constant 0 : i32
    %c0_i32_0 = arith.constant 0 : i32
    %c0_i32_1 = arith.constant 0 : i32
    return %arg0, %c0_i32, %c0_i32_0 : i32, i32, i32
  }
  func.func @transform_3(%arg0: i32, %arg1: i32, %arg2: i32) -> (i32, i32, i32) {
    %c0_i32 = arith.constant 0 : i32
    %c0_i32_0 = arith.constant 0 : i32
    return %arg0, %arg1, %c0_i32 : i32, i32, i32
  }
}

</mosaic_0001>

<llo_original>
// kernel: tpu_custom_call.1
$region0: #{tpu_custom_call.1}
  #allocation0 [shape = 'u32[]', space=smem, size = 0x4, offset = 0x4, fixed_abs, tag = 'smem constant byte address 0x4 - core index']
  #allocation1 [shape = 'u32[144,128]{1,0:T(1,128)}', space=vmem, size = 0x12000, scoped, tag = 'internal scratch']
  #allocation2 [shape = 'f32[4,16,1]{2,1,0:T(8,128)}', space=vmem, size = 0x8000, scoped, tag = 'scratch operand']
  #allocation3 [shape = 'f32[4,16,1]{2,1,0:T(8,128)}', space=vmem, size = 0x8000, scoped, tag = 'scratch operand']
  #allocation4 [shape = 'f32[4,16,32]{2,1,0:T(8,128)}', space=vmem, size = 0x8000, scoped, tag = 'scratch operand']
  %s0 = inlined_call_operand.hbm [shape: f32[8,16,32], index: 0, kind: input, shape index: {}]
  %s1 = inlined_call_operand.hbm [shape: bf16[8,16,32], index: 1, kind: input, shape index: {}]
  %s2 = inlined_call_operand.hbm [shape: bf16[8,16,32], index: 2, kind: input, shape index: {}]
  %s3 = inlined_call_operand.hbm [shape: f32[8,16,32], index: 3, kind: output, shape index: {}]
  %s4 = sld [smem:[#allocation0]]
  $region65: #{tpu_custom_call.1} parent=0
    _
  %s6 = ssub.s32 1, %s4
  %s7 = scalar_select 0, %s6, %s4
  $region1: #{tpu_custom_call.1} parent=0
    #allocation5 [shape = 'u8[65536]{0}', space=vmem, size = 0x10000, scoped, tag = 'input window, operand 0']
    #allocation6 [shape = 's32[2]{0}', space=sflag, size = 0x8, scoped, tag = 'scoped memory for tpu_custom_call.1']
    #allocation7 [shape = 's32[2]{0}', space=sflag, size = 0x8, scoped, tag = 'scoped memory for tpu_custom_call.1']
    #allocation8 [shape = 'u8[32768]{0}', space=vmem, size = 0x8000, scoped, tag = 'input window, operand 1']
    #allocation9 [shape = 's32[2]{0}', space=sflag, size = 0x8, scoped, tag = 'scoped memory for tpu_custom_call.1']
    #allocation10 [shape = 'u8[32768]{0}', space=vmem, size = 0x8000, scoped, tag = 'input window, operand 2']
    #allocation11 [shape = 'u8[65536]{0}', space=vmem, size = 0x10000, scoped, tag = 'output window, operand 0']
    %8 = vsyncpa [#allocation6], 0
    %s9 = scalar_lea.sflag [#allocation6], 1
    %10 = vsyncpa %s9, 0
    %11 = vsyncpa [#allocation9], 0
    %s12 = scalar_lea.sflag [#allocation9], 1
    %13 = vsyncpa %s12, 0
    %14 = vsyncpa [#allocation7], 0
    %s15 = scalar_lea.sflag [#allocation7], 1
    %16 = vsyncpa %s15, 0
    loop: start=0, step=1, limit=4
    $region2: #{tpu_custom_call.1} parent=1 // loop_pre_header
      _
    $region3: #{tpu_custom_call.1} parent=1 // loop_header
      %s18 = sphi 0, %s22
      %p19 = scmp.ge.s32.totalorder %s18, 4
      %s25 = sphi 0, %s44
      %s26 = sphi 0, %s40
      %s27 = sphi 0, %s36
      %s28 = sphi 0, %s25
      %s29 = sphi 0, %s26
      %s30 = sphi 0, %s27
      %s31 = sphi 0, %s28
      %s32 = sphi 0, %s29
      %s33 = sphi 0, %s30
      %s49 = sphi 0, %s51
      %s52 = sphi 0, %s49
      %s53 = sphi 0, %s52
      %s69 = sphi 0, %s53
      %s75 = sphi 0, %s77
      %s78 = sphi 0, %s75
      %s79 = sphi 0, %s78
      %s95 = sphi 0, %s79
      %s101 = sphi 0, %s103
      %s104 = sphi 0, %s101
      %s105 = sphi 0, %s104
      %s121 = sphi 0, %s105
      %s129 = sphi 0, %s131
      %s132 = sphi 0, %s129
      %s133 = sphi 0, %s132
      %s149 = sphi 0, %s133
    $region4: #{tpu_custom_call.1} parent=1 // loop_header_branch
      %21 = sbr.rel (%p19) target = $region8
    $region5: #{tpu_custom_call.1} parent=1 // loop_body
      %s23 = ssub.s32 %s18, 1
      %s24 = ssub.s32 %s18, 2
      %s34 = sadd.s32 1, %s27
      %p35 = scmp.ge.s32.totalorder %s34, 1
      %s36 = scalar_select %p35, 0, %s34
      %s37 = sadd.s32 1, %s26
      %s38 = scalar_select %p35, %s37, %s26
      %p39 = scmp.ge.s32.totalorder %s38, 1
      %s40 = scalar_select %p39, 0, %s38
      %s41 = sadd.s32 1, %s25
      %s42 = scalar_select %p39, %s41, %s25
      %p43 = scmp.ge.s32.totalorder %s42, 2
      %s44 = scalar_select %p43, 0, %s42
      %s45 = ssub.s32 %s25, %s44
      %s46 = ssub.s32 %s26, %s40
      %s47 = sor.u32 %s45, %s46
      %p48 = scmp.eq.s32.totalorder %s47, 0
      %s50 = sadd.s32 %s49, 1
      %s51 = scalar_select %p48, %s49, %s50
      %p54 = pneg %p48
      %p55 = scmp.eq.s32.totalorder %s18, 1
      %p56 = por %p54, %p55
      %p57 = scmp.ne.s32.totalorder %s49, %s52
      %p58 = scmp.eq.s32.totalorder %s18, 0
      %p59 = por %p57, %p58
      %p60 = scmp.ne.s32.totalorder %s49, %s52
      %p61 = scmp.eq.s32.totalorder %s23, 1
      %p62 = por %p60, %p61
      %p63 = scmp.ne.s32.totalorder %s52, %s53
      %p64 = scmp.eq.s32.totalorder %s23, 0
      %p65 = por %p63, %p64
      %p66 = scmp.ne.s32.totalorder %s52, %s53
      %p67 = scmp.eq.s32.totalorder %s24, 1
      %p68 = por %p66, %p67
      %p70 = scmp.ne.s32.totalorder %s53, %s69
      %p71 = scmp.eq.s32.totalorder %s24, 0
      %p72 = por %p70, %p71
      %s73 = ssub.s32 %s25, %s44
      %p74 = scmp.eq.s32.totalorder %s73, 0
      %s76 = sadd.s32 %s75, 1
      %s77 = scalar_select %p74, %s75, %s76
      %p80 = pneg %p74
      %p81 = scmp.eq.s32.totalorder %s18, 1
      %p82 = por %p80, %p81
      %p83 = scmp.ne.s32.totalorder %s75, %s78
      %p84 = scmp.eq.s32.totalorder %s18, 0
      %p85 = por %p83, %p84
      %p86 = scmp.ne.s32.totalorder %s75, %s78
      %p87 = scmp.eq.s32.totalorder %s23, 1
      %p88 = por %p86, %p87
      %p89 = scmp.ne.s32.totalorder %s78, %s79
      %p90 = scmp.eq.s32.totalorder %s23, 0
      %p91 = por %p89, %p90
      %p92 = scmp.ne.s32.totalorder %s78, %s79
      %p93 = scmp.eq.s32.totalorder %s24, 1
      %p94 = por %p92, %p93
      %p96 = scmp.ne.s32.totalorder %s79, %s95
      %p97 = scmp.eq.s32.totalorder %s24, 0
      %p98 = por %p96, %p97
      %s99 = ssub.s32 %s25, %s44
      %p100 = scmp.eq.s32.totalorder %s99, 0
      %s102 = sadd.s32 %s101, 1
      %s103 = scalar_select %p100, %s101, %s102
      %p106 = pneg %p100
      %p107 = scmp.eq.s32.totalorder %s18, 1
      %p108 = por %p106, %p107
      %p109 = scmp.ne.s32.totalorder %s101, %s104
      %p110 = scmp.eq.s32.totalorder %s18, 0
      %p111 = por %p109, %p110
      %p112 = scmp.ne.s32.totalorder %s101, %s104
      %p113 = scmp.eq.s32.totalorder %s23, 1
      %p114 = por %p112, %p113
      %p115 = scmp.ne.s32.totalorder %s104, %s105
      %p116 = scmp.eq.s32.totalorder %s23, 0
      %p117 = por %p115, %p116
      %p118 = scmp.ne.s32.totalorder %s104, %s105
      %p119 = scmp.eq.s32.totalorder %s24, 1
      %p120 = por %p118, %p119
      %p122 = scmp.ne.s32.totalorder %s105, %s121
      %p123 = scmp.eq.s32.totalorder %s24, 0
      %p124 = por %p122, %p123
      %s125 = ssub.s32 %s25, %s44
      %s126 = ssub.s32 %s26, %s40
      %s127 = sor.u32 %s125, %s126
      %p128 = scmp.eq.s32.totalorder %s127, 0
      %s130 = sadd.s32 %s129, 1
      %s131 = scalar_select %p128, %s129, %s130
      %p134 = pneg %p128
      %p135 = scmp.eq.s32.totalorder %s18, 1
      %p136 = por %p134, %p135
      %p137 = scmp.ne.s32.totalorder %s129, %s132
      %p138 = scmp.eq.s32.totalorder %s18, 0
      %p139 = por %p137, %p138
      %p140 = scmp.ne.s32.totalorder %s129, %s132
      %p141 = scmp.eq.s32.totalorder %s23, 1
      %p142 = por %p140, %p141
      %p143 = scmp.ne.s32.totalorder %s132, %s133
      %p144 = scmp.eq.s32.totalorder %s23, 0
      %p145 = por %p143, %p144
      %p146 = scmp.ne.s32.totalorder %s132, %s133
      %p147 = scmp.eq.s32.totalorder %s24, 1
      %p148 = por %p146, %p147
      %p150 = scmp.ne.s32.totalorder %s133, %s149
      %p151 = scmp.eq.s32.totalorder %s24, 0
      %p152 = por %p150, %p151
      %p153 = scmp.le.s32.totalorder 1, %s18
      %p154 = scmp.lt.s32.totalorder %s18, 3
      %p155 = pnand %p153, %p154
      %p156 = pneg %p155
      // Predicated region
      $region9: #{tpu_custom_call.1} parent=5 // pred_check
        _
      $region10: #{tpu_custom_call.1} parent=5 // pred_check_branch
        %158 = sbr.rel (%p155) target = $region12
      $region11: #{tpu_custom_call.1} parent=5 // pred_region
        %s159 = ssub.s32 %s18, 1
      $region12: #{tpu_custom_call.1} parent=5 // pred_fallthru
        _
      %p160 = scmp.lt.s32.totalorder %s18, 2
      // Predicated region
      $region13: #{tpu_custom_call.1} parent=5 // pred_check
        %p161 = pneg %p160
      $region14: #{tpu_custom_call.1} parent=5 // pred_check_branch
        %163 = sbr.rel (%p161) target = $region16
      $region15: #{tpu_custom_call.1} parent=5 // pred_region
        // Predicated region
        $region17: #{tpu_custom_call.1} parent=15 // pred_check
          %p164 = pneg %p59
        $region18: #{tpu_custom_call.1} parent=15 // pred_check_branch
          %166 = sbr.rel (%p164) target = $region20
        $region19: #{tpu_custom_call.1} parent=15 // pred_region
          %s167 = sand.u32 %s49, 1
          %s168 = scalar_lea.sflag [#allocation6], %s167
          %s169 = sand.u32 %s49, 1
          %s170 = smul.addr %s169, 64
          %s171 = scalar_lea.vmem [#allocation5], %s170
          %s172 = smul.u32 4, %s25
          %s173 = smul.u32 2, %s26
          %s175 = ssub.s32 1024, 1024
          %176 = vsyncadd %s168, %s175
          %s177 = smul.addr %s172, 2
          %s178 = sadd.s32 %s173, %s177
          %s179 = smul.addr %s178, 128
          %s180 = scalar_lea.hbm %s0, %s179
          %s181 = sshll.u32 %s171, 4
          %s182 = int_to_ptr.vmem [resolvable:$true] %s181
          %187 = dma.hbm_to_vmem [thread:$0]  %s180, 1024, %s182, %s168, 128, 128, 8
        $region20: #{tpu_custom_call.1} parent=15 // pred_fallthru
          _
        // Predicated region
        $region21: #{tpu_custom_call.1} parent=15 // pred_check
          %p188 = pneg %p85
        $region22: #{tpu_custom_call.1} parent=15 // pred_check_branch
          %190 = sbr.rel (%p188) target = $region24
        $region23: #{tpu_custom_call.1} parent=15 // pred_region
          %s191 = sand.u32 %s18, 1
          %s192 = scalar_lea.sflag [#allocation9], %s191
          %s193 = sand.u32 %s75, 1
          %s194 = smul.addr %s193, 32
          %s195 = scalar_lea.vmem [#allocation8], %s194
          %s196 = smul.u32 4, %s25
          %s198 = ssub.s32 512, 512
          %199 = vsyncadd %s192, %s198
          %s200 = smul.addr %s196, 2
          %s201 = smul.addr %s200, 64
          %s202 = scalar_lea.hbm %s1, %s201
          %s203 = sshll.u32 %s195, 4
          %s204 = int_to_ptr.vmem [resolvable:$true] %s203
          %209 = dma.hbm_to_vmem [thread:$0]  %s202, 512, %s204, %s192, 64, 64, 4
        $region24: #{tpu_custom_call.1} parent=15 // pred_fallthru
          _
        // Predicated region
        $region25: #{tpu_custom_call.1} parent=15 // pred_check
          %p210 = pneg %p111
        $region26: #{tpu_custom_call.1} parent=15 // pred_check_branch
          %212 = sbr.rel (%p210) target = $region28
        $region27: #{tpu_custom_call.1} parent=15 // pred_region
          %s213 = sand.u32 %s18, 1
          %s214 = scalar_lea.sflag [#allocation9], %s213
          %s215 = sand.u32 %s101, 1
          %s216 = smul.addr %s215, 32
          %s217 = scalar_lea.vmem [#allocation10], %s216
          %s218 = smul.u32 4, %s25
          %s220 = ssub.s32 512, 512
          %221 = vsyncadd %s214, %s220
          %s222 = smul.addr %s218, 2
          %s223 = smul.addr %s222, 64
          %s224 = scalar_lea.hbm %s2, %s223
          %s225 = sshll.u32 %s217, 4
          %s226 = int_to_ptr.vmem [resolvable:$true] %s225
          %231 = dma.hbm_to_vmem [thread:$0]  %s224, 512, %s226, %s214, 64, 64, 4
        $region28: #{tpu_custom_call.1} parent=15 // pred_fallthru
          _
      $region16: #{tpu_custom_call.1} parent=5 // pred_fallthru
        _
      %p232 = scmp.le.s32.totalorder 1, %s18
      %p233 = scmp.lt.s32.totalorder %s18, 3
      %p234 = pnand %p232, %p233
      %p235 = pneg %p234
      // Predicated region
      $region29: #{tpu_custom_call.1} parent=5 // pred_check
        _
      $region30: #{tpu_custom_call.1} parent=5 // pred_check_branch
        %237 = sbr.rel (%p234) target = $region32
      $region31: #{tpu_custom_call.1} parent=5 // pred_region
        %s238 = ssub.s32 %s18, 1
        %s239 = sand.u32 %s52, 1
        %s240 = scalar_lea.sflag [#allocation6], %s239
        %s241 = sand.u32 %s52, 1
        %s242 = smul.addr %s241, 64
        %s243 = scalar_lea.vmem [#allocation5], %s242
        // Predicated region
        $region33: #{tpu_custom_call.1} parent=31 // pred_check
          %p244 = pneg %p65
        $region34: #{tpu_custom_call.1} parent=31 // pred_check_branch
          %246 = sbr.rel (%p244) target = $region36
        $region35: #{tpu_custom_call.1} parent=31 // pred_region
          %247 = dma.done %s240, 1024
        $region36: #{tpu_custom_call.1} parent=31 // pred_fallthru
          _
        %s248 = sand.u32 %s23, 1
        %s249 = scalar_lea.sflag [#allocation9], %s248
        %s250 = sand.u32 %s78, 1
        %s251 = smul.addr %s250, 32
        %s252 = scalar_lea.vmem [#allocation8], %s251
        // Predicated region
        $region37: #{tpu_custom_call.1} parent=31 // pred_check
          %p253 = pneg %p91
        $region38: #{tpu_custom_call.1} parent=31 // pred_check_branch
          %255 = sbr.rel (%p253) target = $region40
        $region39: #{tpu_custom_call.1} parent=31 // pred_region
          %256 = dma.done %s249, 512
        $region40: #{tpu_custom_call.1} parent=31 // pred_fallthru
          _
        %s257 = sand.u32 %s23, 1
        %s258 = scalar_lea.sflag [#allocation9], %s257
        %s259 = sand.u32 %s104, 1
        %s260 = smul.addr %s259, 32
        %s261 = scalar_lea.vmem [#allocation10], %s260
        // Predicated region
        $region41: #{tpu_custom_call.1} parent=31 // pred_check
          %p262 = pneg %p117
        $region42: #{tpu_custom_call.1} parent=31 // pred_check_branch
          %264 = sbr.rel (%p262) target = $region44
        $region43: #{tpu_custom_call.1} parent=31 // pred_region
          %265 = dma.done %s258, 512
        $region44: #{tpu_custom_call.1} parent=31 // pred_fallthru
          _
        %s266 = sand.u32 %s52, 1
        %s267 = scalar_lea.sflag [#allocation6], %s266
        %s268 = sand.u32 %s52, 1
        %s269 = smul.addr %s268, 64
        %s270 = scalar_lea.vmem [#allocation5], %s269
        %p271 = pneg %p65
        %p272 = pneg %p62
        %s273 = sand.u32 %s23, 1
        %s274 = scalar_lea.sflag [#allocation9], %s273
        %s275 = sand.u32 %s78, 1
        %s276 = smul.addr %s275, 32
        %s277 = scalar_lea.vmem [#allocation8], %s276
        %p278 = pneg %p91
        %p279 = pneg %p88
        %s280 = sand.u32 %s23, 1
        %s281 = scalar_lea.sflag [#allocation9], %s280
        %s282 = sand.u32 %s104, 1
        %s283 = smul.addr %s282, 32
        %s284 = scalar_lea.vmem [#allocation10], %s283
        %p285 = pneg %p117
        %p286 = pneg %p114
        %p287 = pneg %p145
        %p288 = pneg %p142
        %s289 = sand.u32 %s132, 1
        %s290 = scalar_lea.sflag [#allocation7], %s289
        %s291 = sand.u32 %s132, 1
        %s292 = smul.addr %s291, 64
        %s293 = scalar_lea.vmem [#allocation11], %s292
        %s294 = smul.u32 4, %s28
        %s295 = smul.u32 2, %s29
        %s296 = smul.u32 4, %s28
        %s297 = smul.u32 4, %s28
        %s298 = smul.u32 4, %s28
        %s299 = smul.u32 2, %s29
        %p301 = scmp.eq.s32.totalorder %s30, 0
        // Predicated region
        $region45: #{tpu_custom_call.1} parent=31 // pred_check
          %p302 = pneg %p301
        $region46: #{tpu_custom_call.1} parent=31 // pred_check_branch
          %304 = sbr.rel (%p302) target = $region48
        $region47: #{tpu_custom_call.1} parent=31 // pred_region
          %vm305 = vcmask 7168
          %306 = vst.msk [vmem:[#allocation2] sm:$0xff] %vm305, -inf
          %307 = vst.msk [vmem:[#allocation2 + $0x8] sm:$0xff] %vm305, -inf
          %308 = vst.msk [vmem:[#allocation2 + $0x10] sm:$0xff] %vm305, -inf
          %309 = vst.msk [vmem:[#allocation2 + $0x18] sm:$0xff] %vm305, -inf
          %310 = vst.msk [vmem:[#allocation2 + $0x20] sm:$0xff] %vm305, -inf
          %311 = vst.msk [vmem:[#allocation2 + $0x28] sm:$0xff] %vm305, -inf
          %312 = vst.msk [vmem:[#allocation2 + $0x30] sm:$0xff] %vm305, -inf
          %313 = vst.msk [vmem:[#allocation2 + $0x38] sm:$0xff] %vm305, -inf
          %314 = vst.msk [vmem:[#allocation3] sm:$0xff] %vm305, 0.0
          %315 = vst.msk [vmem:[#allocation3 + $0x8] sm:$0xff] %vm305, 0.0
          %316 = vst.msk [vmem:[#allocation3 + $0x10] sm:$0xff] %vm305, 0.0
          %317 = vst.msk [vmem:[#allocation3 + $0x18] sm:$0xff] %vm305, 0.0
          %318 = vst.msk [vmem:[#allocation3 + $0x20] sm:$0xff] %vm305, 0.0
          %319 = vst.msk [vmem:[#allocation3 + $0x28] sm:$0xff] %vm305, 0.0
          %320 = vst.msk [vmem:[#allocation3 + $0x30] sm:$0xff] %vm305, 0.0
          %321 = vst.msk [vmem:[#allocation3 + $0x38] sm:$0xff] %vm305, 0.0
          %vm322 = vcmask 261120
          %323 = vst.msk [vmem:[#allocation4] sm:$0xff] %vm322, 0.0
          %324 = vst.msk [vmem:[#allocation4 + $0x8] sm:$0xff] %vm322, 0.0
          %325 = vst.msk [vmem:[#allocation4 + $0x10] sm:$0xff] %vm322, 0.0
          %326 = vst.msk [vmem:[#allocation4 + $0x18] sm:$0xff] %vm322, 0.0
          %327 = vst.msk [vmem:[#allocation4 + $0x20] sm:$0xff] %vm322, 0.0
          %328 = vst.msk [vmem:[#allocation4 + $0x28] sm:$0xff] %vm322, 0.0
          %329 = vst.msk [vmem:[#allocation4 + $0x30] sm:$0xff] %vm322, 0.0
          %330 = vst.msk [vmem:[#allocation4 + $0x38] sm:$0xff] %vm322, 0.0
        $region48: #{tpu_custom_call.1} parent=31 // pred_fallthru
          _
        %v331 = vld [vmem:[%s243] sm:$0xff]
        %v332 = vld [vmem:[%s243 + $0x8] sm:$0xff]
        %v333 = vld [vmem:[%s243 + $0x10] sm:$0xff]
        %v334 = vld [vmem:[%s243 + $0x18] sm:$0xff]
        %v335 = vld [vmem:[%s243 + $0x20] sm:$0xff]
        %v336 = vld [vmem:[%s243 + $0x28] sm:$0xff]
        %v337 = vld [vmem:[%s243 + $0x30] sm:$0xff]
        %v338 = vld [vmem:[%s243 + $0x38] sm:$0xff]
        %v339 = vmul.f32 %v331, 0.17677669
        %v340 = vmul.f32 %v332, 0.17677669
        %v341 = vmul.f32 %v333, 0.17677669
        %v342 = vmul.f32 %v334, 0.17677669
        %v343 = vmul.f32 %v335, 0.17677669
        %v344 = vmul.f32 %v336, 0.17677669
        %v345 = vmul.f32 %v337, 0.17677669
        %v346 = vmul.f32 %v338, 0.17677669
        %v347 = vpack.c.bf16 %v340, %v339
        %v348 = vpack.c.bf16 %v342, %v341
        %v349 = vpack.c.bf16 %v344, %v343
        %v350 = vpack.c.bf16 %v346, %v345
        %s351 = smul.u32 %s30, 16
        %s352 = sshra.s32 %s351, 3
        %s353 = sand.u32 %s351, 7
        %s354 = smul.addr %s352, 4
        %s355 = scalar_lea.vmem %s252, %s354 [#allocation8]
        %v356 = vld [vmem:[%s355] sm:$0xf]
        %v357 = vld [vmem:[%s355 + $0x4] sm:$0xf]
        %v358 = vld [vmem:[%s355 + $0x8] sm:$0xf]
        %v359 = vld [vmem:[%s355 + $0xc] sm:$0xf]
        %v360 = vld [vmem:[%s355 + $0x10] sm:$0xf]
        %v361 = vld [vmem:[%s355 + $0x14] sm:$0xf]
        %v362 = vld [vmem:[%s355 + $0x18] sm:$0xf]
        %v363 = vld [vmem:[%s355 + $0x1c] sm:$0xf]
        %s364 = smul.addr %s352, 4
        %s365 = scalar_lea.vmem %s261, %s364 [#allocation10]
        %v366 = vld [vmem:[%s365] sm:$0xf]
        %v367 = vld [vmem:[%s365 + $0x4] sm:$0xf]
        %v368 = vld [vmem:[%s365 + $0x8] sm:$0xf]
        %v369 = vld [vmem:[%s365 + $0xc] sm:$0xf]
        %v370 = vld [vmem:[%s365 + $0x10] sm:$0xf]
        %v371 = vld [vmem:[%s365 + $0x14] sm:$0xf]
        %v372 = vld [vmem:[%s365 + $0x18] sm:$0xf]
        %v373 = vld [vmem:[%s365 + $0x1c] sm:$0xf]
        %v376 = vunpack.c.l.b16 %v356
        %v377 = vunpack.c.l.b16 %v357
        %v378 = vpack.c.b16 %v377, %v376
        %vm379 = vcmask 261120
        %v381 = vsel %vm379, %v347, 0
        %v384 = vsel %vm379, %v378, 0
        %386 = vmatprep.subr.bf16.mxu0 0
        %387 = vmatpush1.bf16.xpose.msra.mxu0 %v384
        %388 = vmatprep.subr.bf16.mxu0 0
        %389 = vmatpush1.bf16.xpose.msra.mxu0 0
        %390 = vmatprep.subr.bf16.mxu0 0
        %391 = vmatpush1.bf16.xpose.msra.mxu0 0
        %392 = vmatprep.subr.bf16.mxu0 0
        %393 = vmatpush1.bf16.xpose.msra.mxu0 0
        %394 = vmatprep.subr.bf16.mxu0 0
        %395 = vmatpush1.bf16.xpose.msra.mxu0 0
        %396 = vmatprep.subr.bf16.mxu0 0
        %397 = vmatpush1.bf16.xpose.msra.mxu0 0
        %398 = vmatprep.subr.bf16.mxu0 0
        %399 = vmatpush1.bf16.xpose.msra.mxu0 0
        %400 = vmatprep.subr.bf16.mxu0 0
        %401 = vmatpush1.bf16.xpose.msra.mxu0 0
        %402 = vmatprep.subr.bf16.mxu0 0
        %403 = vmatpush1.bf16.xpose.msra.mxu0 0
        %404 = vmatprep.subr.bf16.mxu0 0
        %405 = vmatpush1.bf16.xpose.msra.mxu0 0
        %406 = vmatprep.subr.bf16.mxu0 0
        %407 = vmatpush1.bf16.xpose.msra.mxu0 0
        %408 = vmatprep.subr.bf16.mxu0 0
        %409 = vmatpush1.bf16.xpose.msra.mxu0 0
        %410 = vmatprep.subr.bf16.mxu0 0
        %411 = vmatpush1.bf16.xpose.msra.mxu0 0
        %412 = vmatprep.subr.bf16.mxu0 0
        %413 = vmatpush1.bf16.xpose.msra.mxu0 0
        %414 = vmatprep.subr.bf16.mxu0 0
        %415 = vmatpush1.bf16.xpose.msra.mxu0 0
        %416 = vmatprep.subr.bf16.mxu0 0
        %417 = vmatpush1.bf16.xpose.msra.mxu0 0
        %418 = vmatprep.mubr.bf16.mxu0 0
        %419 = vmatmul.mubr.bf16.gmra.mrb[0].mxu0 %v381
        %v420 = vpop.f32.mrb[0].mxu0
        %v421 = vadd.f32 0.0, %v420
        %v422 = vpop.f32.mrb[0].mxu0
        %v423 = vpop.f32.mrb[0].mxu0
        %v424 = vadd.f32 0.0, %v423
        %v425 = vpop.f32.mrb[0].mxu0
        %426 = vdwg.mxu0
        %v429 = vunpack.c.l.b16 %v358
        %v430 = vunpack.c.l.b16 %v359
        %v431 = vpack.c.b16 %v430, %v429
        %v433 = vsel %vm379, %v348, 0
        %v436 = vsel %vm379, %v431, 0
        %438 = vmatprep.subr.bf16.mxu0 0
        %439 = vmatpush1.bf16.xpose.msra.mxu0 %v436
        %440 = vmatprep.subr.bf16.mxu0 0
        %441 = vmatpush1.bf16.xpose.msra.mxu0 0
        %442 = vmatprep.subr.bf16.mxu0 0
        %443 = vmatpush1.bf16.xpose.msra.mxu0 0
        %444 = vmatprep.subr.bf16.mxu0 0
        %445 = vmatpush1.bf16.xpose.msra.mxu0 0
        %446 = vmatprep.subr.bf16.mxu0 0
        %447 = vmatpush1.bf16.xpose.msra.mxu0 0
        %448 = vmatprep.subr.bf16.mxu0 0
        %449 = vmatpush1.bf16.xpose.msra.mxu0 0
        %450 = vmatprep.subr.bf16.mxu0 0
        %451 = vmatpush1.bf16.xpose.msra.mxu0 0
        %452 = vmatprep.subr.bf16.mxu0 0
        %453 = vmatpush1.bf16.xpose.msra.mxu0 0
        %454 = vmatprep.subr.bf16.mxu0 0
        %455 = vmatpush1.bf16.xpose.msra.mxu0 0
        %456 = vmatprep.subr.bf16.mxu0 0
        %457 = vmatpush1.bf16.xpose.msra.mxu0 0
        %458 = vmatprep.subr.bf16.mxu0 0
        %459 = vmatpush1.bf16.xpose.msra.mxu0 0
        %460 = vmatprep.subr.bf16.mxu0 0
        %461 = vmatpush1.bf16.xpose.msra.mxu0 0
        %462 = vmatprep.subr.bf16.mxu0 0
        %463 = vmatpush1.bf16.xpose.msra.mxu0 0
        %464 = vmatprep.subr.bf16.mxu0 0
        %465 = vmatpush1.bf16.xpose.msra.mxu0 0
        %466 = vmatprep.subr.bf16.mxu0 0
        %467 = vmatpush1.bf16.xpose.msra.mxu0 0
        %468 = vmatprep.subr.bf16.mxu0 0
        %469 = vmatpush1.bf16.xpose.msra.mxu0 0
        %470 = vmatprep.mubr.bf16.mxu0 0
        %471 = vmatmul.mubr.bf16.gmra.mrb[0].mxu0 %v433
        %v472 = vpop.f32.mrb[0].mxu0
        %v473 = vadd.f32 0.0, %v472
        %v474 = vpop.f32.mrb[0].mxu0
        %v475 = vpop.f32.mrb[0].mxu0
        %v476 = vadd.f32 0.0, %v475
        %v477 = vpop.f32.mrb[0].mxu0
        %478 = vdwg.mxu0
        %v481 = vunpack.c.l.b16 %v360
        %v482 = vunpack.c.l.b16 %v361
        %v483 = vpack.c.b16 %v482, %v481
        %v485 = vsel %vm379, %v349, 0
        %v488 = vsel %vm379, %v483, 0
        %490 = vmatprep.subr.bf16.mxu0 0
        %491 = vmatpush1.bf16.xpose.msra.mxu0 %v488
        %492 = vmatprep.subr.bf16.mxu0 0
        %493 = vmatpush1.bf16.xpose.msra.mxu0 0
        %494 = vmatprep.subr.bf16.mxu0 0
        %495 = vmatpush1.bf16.xpose.msra.mxu0 0
        %496 = vmatprep.subr.bf16.mxu0 0
        %497 = vmatpush1.bf16.xpose.msra.mxu0 0
        %498 = vmatprep.subr.bf16.mxu0 0
        %499 = vmatpush1.bf16.xpose.msra.mxu0 0
        %500 = vmatprep.subr.bf16.mxu0 0
        %501 = vmatpush1.bf16.xpose.msra.mxu0 0
        %502 = vmatprep.subr.bf16.mxu0 0
        %503 = vmatpush1.bf16.xpose.msra.mxu0 0
        %504 = vmatprep.subr.bf16.mxu0 0
        %505 = vmatpush1.bf16.xpose.msra.mxu0 0
        %506 = vmatprep.subr.bf16.mxu0 0
        %507 = vmatpush1.bf16.xpose.msra.mxu0 0
        %508 = vmatprep.subr.bf16.mxu0 0
        %509 = vmatpush1.bf16.xpose.msra.mxu0 0
        %510 = vmatprep.subr.bf16.mxu0 0
        %511 = vmatpush1.bf16.xpose.msra.mxu0 0
        %512 = vmatprep.subr.bf16.mxu0 0
        %513 = vmatpush1.bf16.xpose.msra.mxu0 0
        %514 = vmatprep.subr.bf16.mxu0 0
        %515 = vmatpush1.bf16.xpose.msra.mxu0 0
        %516 = vmatprep.subr.bf16.mxu0 0
        %517 = vmatpush1.bf16.xpose.msra.mxu0 0
        %518 = vmatprep.subr.bf16.mxu0 0
        %519 = vmatpush1.bf16.xpose.msra.mxu0 0
        %520 = vmatprep.subr.bf16.mxu0 0
        %521 = vmatpush1.bf16.xpose.msra.mxu0 0
        %522 = vmatprep.mubr.bf16.mxu0 0
        %523 = vmatmul.mubr.bf16.gmra.mrb[0].mxu0 %v485
        %v524 = vpop.f32.mrb[0].mxu0
        %v525 = vadd.f32 0.0, %v524
        %v526 = vpop.f32.mrb[0].mxu0
        %v527 = vpop.f32.mrb[0].mxu0
        %v528 = vadd.f32 0.0, %v527
        %v529 = vpop.f32.mrb[0].mxu0
        %530 = vdwg.mxu0
        %v533 = vunpack.c.l.b16 %v362
        %v534 = vunpack.c.l.b16 %v363
        %v535 = vpack.c.b16 %v534, %v533
        %v537 = vsel %vm379, %v350, 0
        %v540 = vsel %vm379, %v535, 0
        %542 = vmatprep.subr.bf16.mxu0 0
        %543 = vmatpush1.bf16.xpose.msra.mxu0 %v540
        %544 = vmatprep.subr.bf16.mxu0 0
        %545 = vmatpush1.bf16.xpose.msra.mxu0 0
        %546 = vmatprep.subr.bf16.mxu0 0
        %547 = vmatpush1.bf16.xpose.msra.mxu0 0
        %548 = vmatprep.subr.bf16.mxu0 0
        %549 = vmatpush1.bf16.xpose.msra.mxu0 0
        %550 = vmatprep.subr.bf16.mxu0 0
        %551 = vmatpush1.bf16.xpose.msra.mxu0 0
        %552 = vmatprep.subr.bf16.mxu0 0
        %553 = vmatpush1.bf16.xpose.msra.mxu0 0
        %554 = vmatprep.subr.bf16.mxu0 0
        %555 = vmatpush1.bf16.xpose.msra.mxu0 0
        %556 = vmatprep.subr.bf16.mxu0 0
        %557 = vmatpush1.bf16.xpose.msra.mxu0 0
        %558 = vmatprep.subr.bf16.mxu0 0
        %559 = vmatpush1.bf16.xpose.msra.mxu0 0
        %560 = vmatprep.subr.bf16.mxu0 0
        %561 = vmatpush1.bf16.xpose.msra.mxu0 0
        %562 = vmatprep.subr.bf16.mxu0 0
        %563 = vmatpush1.bf16.xpose.msra.mxu0 0
        %564 = vmatprep.subr.bf16.mxu0 0
        %565 = vmatpush1.bf16.xpose.msra.mxu0 0
        %566 = vmatprep.subr.bf16.mxu0 0
        %567 = vmatpush1.bf16.xpose.msra.mxu0 0
        %568 = vmatprep.subr.bf16.mxu0 0
        %569 = vmatpush1.bf16.xpose.msra.mxu0 0
        %570 = vmatprep.subr.bf16.mxu0 0
        %571 = vmatpush1.bf16.xpose.msra.mxu0 0
        %572 = vmatprep.subr.bf16.mxu0 0
        %573 = vmatpush1.bf16.xpose.msra.mxu0 0
        %574 = vmatprep.mubr.bf16.mxu0 0
        %575 = vmatmul.mubr.bf16.gmra.mrb[0].mxu0 %v537
        %v576 = vpop.f32.mrb[0].mxu0
        %v577 = vadd.f32 0.0, %v576
        %v578 = vpop.f32.mrb[0].mxu0
        %v579 = vpop.f32.mrb[0].mxu0
        %v580 = vadd.f32 0.0, %v579
        %v581 = vpop.f32.mrb[0].mxu0
        %582 = vdwg.mxu0
        %v583 = vlaneseq
        %v584 = vand.u32 %v583, 127
        %v585 = vstv %s351
        %v586 = vadd.s32 %v585, %v584
        %vm587 = vcmp.lt.s32.totalorder %v586, 8
        %v588 = vsel %vm587, 1, 0
        %vm589 = vcmp.eq.s32.totalorder %v588, 1
        %v590 = vsel %vm589, %v421, -1e+30
        %v591 = vsel %vm589, %v424, -1e+30
        %v592 = vsel %vm589, %v473, -1e+30
        %v593 = vsel %vm589, %v476, -1e+30
        %v594 = vsel %vm589, %v525, -1e+30
        %v595 = vsel %vm589, %v528, -1e+30
        %v596 = vsel %vm589, %v577, -1e+30
        %v597 = vsel %vm589, %v580, -1e+30
        %v598 = vld [vmem:[#allocation2] sm:$0xff]
        %v599 = vld [vmem:[#allocation2 + $0x8] sm:$0xff]
        %v600 = vld [vmem:[#allocation2 + $0x10] sm:$0xff]
        %v601 = vld [vmem:[#allocation2 + $0x18] sm:$0xff]
        %v602 = vld [vmem:[#allocation2 + $0x20] sm:$0xff]
        %v603 = vld [vmem:[#allocation2 + $0x28] sm:$0xff]
        %v604 = vld [vmem:[#allocation2 + $0x30] sm:$0xff]
        %v605 = vld [vmem:[#allocation2 + $0x38] sm:$0xff]
        %vm606 = vcmask 130048
        %v607 = vsel %vm606, %v590, -inf
        %608 = vmax.xlane.f32.xlu0 %v607
        %v609 = vpop.xlane.xlu0 %608
        %v610 = vsel %vm606, %v591, -inf
        %611 = vmax.xlane.f32.xlu0 %v610
        %v612 = vpop.xlane.xlu0 %611
        %v613 = vsel %vm606, %v592, -inf
        %614 = vmax.xlane.f32.xlu0 %v613
        %v615 = vpop.xlane.xlu0 %614
        %v616 = vsel %vm606, %v593, -inf
        %617 = vmax.xlane.f32.xlu0 %v616
        %v618 = vpop.xlane.xlu0 %617
        %v619 = vsel %vm606, %v594, -inf
        %620 = vmax.xlane.f32.xlu0 %v619
        %v621 = vpop.xlane.xlu0 %620
        %v622 = vsel %vm606, %v595, -inf
        %623 = vmax.xlane.f32.xlu0 %v622
        %v624 = vpop.xlane.xlu0 %623
        %v625 = vsel %vm606, %v596, -inf
        %626 = vmax.xlane.f32.xlu0 %v625
        %v627 = vpop.xlane.xlu0 %626
        %v628 = vsel %vm606, %v597, -inf
        %629 = vmax.xlane.f32.xlu0 %v628
        %v630 = vpop.xlane.xlu0 %629
        %v631 = vmax.f32 %v598, %v609
        %v632 = vmax.f32 %v599, %v612
        %v633 = vmax.f32 %v600, %v615
        %v634 = vmax.f32 %v601, %v618
        %v635 = vmax.f32 %v602, %v621
        %v636 = vmax.f32 %v603, %v624
        %v637 = vmax.f32 %v604, %v627
        %v638 = vmax.f32 %v605, %v630
        %v639 = vsub.f32 %v598, %v631
        %v640 = vsub.f32 %v599, %v632
        %v641 = vsub.f32 %v600, %v633
        %v642 = vsub.f32 %v601, %v634
        %v643 = vsub.f32 %v602, %v635
        %v644 = vsub.f32 %v603, %v636
        %v645 = vsub.f32 %v604, %v637
        %v646 = vsub.f32 %v605, %v638
        %v647 = vmul.f32 %v639, 1.442695
        %v648 = vpow.pop %v647
        %v649 = vmul.f32 %v640, 1.442695
        %v650 = vpow.pop %v649
        %v651 = vmul.f32 %v641, 1.442695
        %v652 = vpow.pop %v651
        %v653 = vmul.f32 %v642, 1.442695
        %v654 = vpow.pop %v653
        %v655 = vmul.f32 %v643, 1.442695
        %v656 = vpow.pop %v655
        %v657 = vmul.f32 %v644, 1.442695
        %v658 = vpow.pop %v657
        %v659 = vmul.f32 %v645, 1.442695
        %v660 = vpow.pop %v659
        %v661 = vmul.f32 %v646, 1.442695
        %v662 = vpow.pop %v661
        %664 = vset.pattern.permute.xlu0 0
        %665 = vperm.xlu0 %664, %v631
        %v666 = vpop.permute.xlu0 %665
        %669 = vset.pattern.permute.xlu0 0
        %670 = vperm.xlu0 %669, %v632
        %v671 = vpop.permute.xlu0 %670
        %674 = vset.pattern.permute.xlu0 0
        %675 = vperm.xlu0 %674, %v633
        %v676 = vpop.permute.xlu0 %675
        %679 = vset.pattern.permute.xlu0 0
        %680 = vperm.xlu0 %679, %v634
        %v681 = vpop.permute.xlu0 %680
        %684 = vset.pattern.permute.xlu0 0
        %685 = vperm.xlu0 %684, %v635
        %v686 = vpop.permute.xlu0 %685
        %689 = vset.pattern.permute.xlu0 0
        %690 = vperm.xlu0 %689, %v636
        %v691 = vpop.permute.xlu0 %690
        %694 = vset.pattern.permute.xlu0 0
        %695 = vperm.xlu0 %694, %v637
        %v696 = vpop.permute.xlu0 %695
        %699 = vset.pattern.permute.xlu0 0
        %700 = vperm.xlu0 %699, %v638
        %v701 = vpop.permute.xlu0 %700
        %v703 = vsub.f32 %v590, %v666
        %v704 = vsub.f32 %v591, %v671
        %v705 = vsub.f32 %v592, %v676
        %v706 = vsub.f32 %v593, %v681
        %v707 = vsub.f32 %v594, %v686
        %v708 = vsub.f32 %v595, %v691
        %v709 = vsub.f32 %v596, %v696
        %v710 = vsub.f32 %v597, %v701
        %v711 = vmul.f32 %v703, 1.442695
        %v712 = vpow.pop %v711
        %v713 = vmul.f32 %v704, 1.442695
        %v714 = vpow.pop %v713
        %v715 = vmul.f32 %v705, 1.442695
        %v716 = vpow.pop %v715
        %v717 = vmul.f32 %v706, 1.442695
        %v718 = vpow.pop %v717
        %v719 = vmul.f32 %v707, 1.442695
        %v720 = vpow.pop %v719
        %v721 = vmul.f32 %v708, 1.442695
        %v722 = vpow.pop %v721
        %v723 = vmul.f32 %v709, 1.442695
        %v724 = vpow.pop %v723
        %v725 = vmul.f32 %v710, 1.442695
        %v726 = vpow.pop %v725
        %v727 = vld [vmem:[#allocation3] sm:$0xff]
        %v728 = vld [vmem:[#allocation3 + $0x8] sm:$0xff]
        %v729 = vld [vmem:[#allocation3 + $0x10] sm:$0xff]
        %v730 = vld [vmem:[#allocation3 + $0x18] sm:$0xff]
        %v731 = vld [vmem:[#allocation3 + $0x20] sm:$0xff]
        %v732 = vld [vmem:[#allocation3 + $0x28] sm:$0xff]
        %v733 = vld [vmem:[#allocation3 + $0x30] sm:$0xff]
        %v734 = vld [vmem:[#allocation3 + $0x38] sm:$0xff]
        %v735 = vmul.f32 %v648, %v727
        %v736 = vmul.f32 %v650, %v728
        %v737 = vmul.f32 %v652, %v729
        %v738 = vmul.f32 %v654, %v730
        %v739 = vmul.f32 %v656, %v731
        %v740 = vmul.f32 %v658, %v732
        %v741 = vmul.f32 %v660, %v733
        %v742 = vmul.f32 %v662, %v734
        %v743 = vsel %vm606, %v712, 0.0
        %744 = vadd.xlane.f32.xlu0 %v743
        %v745 = vpop.xlane.xlu0 %744
        %v746 = vsel %vm606, %v714, 0.0
        %747 = vadd.xlane.f32.xlu0 %v746
        %v748 = vpop.xlane.xlu0 %747
        %v749 = vsel %vm606, %v716, 0.0
        %750 = vadd.xlane.f32.xlu0 %v749
        %v751 = vpop.xlane.xlu0 %750
        %v752 = vsel %vm606, %v718, 0.0
        %753 = vadd.xlane.f32.xlu0 %v752
        %v754 = vpop.xlane.xlu0 %753
        %v755 = vsel %vm606, %v720, 0.0
        %756 = vadd.xlane.f32.xlu0 %v755
        %v757 = vpop.xlane.xlu0 %756
        %v758 = vsel %vm606, %v722, 0.0
        %759 = vadd.xlane.f32.xlu0 %v758
        %v760 = vpop.xlane.xlu0 %759
        %v761 = vsel %vm606, %v724, 0.0
        %762 = vadd.xlane.f32.xlu0 %v761
        %v763 = vpop.xlane.xlu0 %762
        %v764 = vsel %vm606, %v726, 0.0
        %765 = vadd.xlane.f32.xlu0 %v764
        %v766 = vpop.xlane.xlu0 %765
        %v767 = vadd.f32 %v735, %v745
        %v768 = vadd.f32 %v736, %v748
        %v769 = vadd.f32 %v737, %v751
        %v770 = vadd.f32 %v738, %v754
        %v771 = vadd.f32 %v739, %v757
        %v772 = vadd.f32 %v740, %v760
        %v773 = vadd.f32 %v741, %v763
        %v774 = vadd.f32 %v742, %v766
        %vm775 = vcmask 7168
        %776 = vst.msk [vmem:[#allocation3] sm:$0xff] %vm775, %v767
        %777 = vst.msk [vmem:[#allocation3 + $0x8] sm:$0xff] %vm775, %v768
        %778 = vst.msk [vmem:[#allocation3 + $0x10] sm:$0xff] %vm775, %v769
        %779 = vst.msk [vmem:[#allocation3 + $0x18] sm:$0xff] %vm775, %v770
        %780 = vst.msk [vmem:[#allocation3 + $0x20] sm:$0xff] %vm775, %v771
        %781 = vst.msk [vmem:[#allocation3 + $0x28] sm:$0xff] %vm775, %v772
        %782 = vst.msk [vmem:[#allocation3 + $0x30] sm:$0xff] %vm775, %v773
        %783 = vst.msk [vmem:[#allocation3 + $0x38] sm:$0xff] %vm775, %v774
        %v784 = vld [vmem:[#allocation4] sm:$0xff]
        %v785 = vld [vmem:[#allocation4 + $0x8] sm:$0xff]
        %v786 = vld [vmem:[#allocation4 + $0x10] sm:$0xff]
        %v787 = vld [vmem:[#allocation4 + $0x18] sm:$0xff]
        %v788 = vld [vmem:[#allocation4 + $0x20] sm:$0xff]
        %v789 = vld [vmem:[#allocation4 + $0x28] sm:$0xff]
        %v790 = vld [vmem:[#allocation4 + $0x30] sm:$0xff]
        %v791 = vld [vmem:[#allocation4 + $0x38] sm:$0xff]
        %793 = vset.pattern.permute.xlu0 0
        %794 = vperm.xlu0 %793, %v648
        %v795 = vpop.permute.xlu0 %794
        %798 = vset.pattern.permute.xlu0 0
        %799 = vperm.xlu0 %798, %v650
        %v800 = vpop.permute.xlu0 %799
        %803 = vset.pattern.permute.xlu0 0
        %804 = vperm.xlu0 %803, %v652
        %v805 = vpop.permute.xlu0 %804
        %808 = vset.pattern.permute.xlu0 0
        %809 = vperm.xlu0 %808, %v654
        %v810 = vpop.permute.xlu0 %809
        %813 = vset.pattern.permute.xlu0 0
        %814 = vperm.xlu0 %813, %v656
        %v815 = vpop.permute.xlu0 %814
        %818 = vset.pattern.permute.xlu0 0
        %819 = vperm.xlu0 %818, %v658
        %v820 = vpop.permute.xlu0 %819
        %823 = vset.pattern.permute.xlu0 0
        %824 = vperm.xlu0 %823, %v660
        %v825 = vpop.permute.xlu0 %824
        %828 = vset.pattern.permute.xlu0 0
        %829 = vperm.xlu0 %828, %v662
        %v830 = vpop.permute.xlu0 %829
        %v832 = vmul.f32 %v795, %v784
        %v833 = vmul.f32 %v800, %v785
        %v834 = vmul.f32 %v805, %v786
        %v835 = vmul.f32 %v810, %v787
        %v836 = vmul.f32 %v815, %v788
        %v837 = vmul.f32 %v820, %v789
        %v838 = vmul.f32 %v825, %v790
        %v839 = vmul.f32 %v830, %v791
        %v840 = vpack.c.bf16 %v714, %v712
        %v841 = vpack.c.bf16 %v718, %v716
        %v842 = vpack.c.bf16 %v722, %v720
        %v843 = vpack.c.bf16 %v726, %v724
        %v846 = vunpack.c.l.b16 %v366
        %v847 = vunpack.c.l.b16 %v367
        %v848 = vpack.c.b16 %v847, %v846
        %v851 = vsel %vm606, %v840, 0
        %853 = vmatprep.subr.bf16.mxu0 0
        %854 = vmatpush1.bf16.msra.mxu0 %v848
        %855 = vmatprep.subr.bf16.mxu0 0
        %856 = vmatpush1.bf16.msra.mxu0 0
        %857 = vmatprep.subr.bf16.mxu0 0
        %858 = vmatpush1.bf16.msra.mxu0 0
        %859 = vmatprep.subr.bf16.mxu0 0
        %860 = vmatpush1.bf16.msra.mxu0 0
        %861 = vmatprep.subr.bf16.mxu0 0
        %862 = vmatpush1.bf16.msra.mxu0 0
        %863 = vmatprep.subr.bf16.mxu0 0
        %864 = vmatpush1.bf16.msra.mxu0 0
        %865 = vmatprep.subr.bf16.mxu0 0
        %866 = vmatpush1.bf16.msra.mxu0 0
        %867 = vmatprep.subr.bf16.mxu0 0
        %868 = vmatpush1.bf16.msra.mxu0 0
        %869 = vmatprep.subr.bf16.mxu0 0
        %870 = vmatpush1.bf16.msra.mxu0 0
        %871 = vmatprep.subr.bf16.mxu0 0
        %872 = vmatpush1.bf16.msra.mxu0 0
        %873 = vmatprep.subr.bf16.mxu0 0
        %874 = vmatpush1.bf16.msra.mxu0 0
        %875 = vmatprep.subr.bf16.mxu0 0
        %876 = vmatpush1.bf16.msra.mxu0 0
        %877 = vmatprep.subr.bf16.mxu0 0
        %878 = vmatpush1.bf16.msra.mxu0 0
        %879 = vmatprep.subr.bf16.mxu0 0
        %880 = vmatpush1.bf16.msra.mxu0 0
        %881 = vmatprep.subr.bf16.mxu0 0
        %882 = vmatpush1.bf16.msra.mxu0 0
        %883 = vmatprep.subr.bf16.mxu0 0
        %884 = vmatpush1.bf16.msra.mxu0 0
        %885 = vmatprep.mubr.bf16.mxu0 0
        %886 = vmatmul.mubr.bf16.gmra.mrb[0].mxu0 %v851
        %v887 = vpop.f32.mrb[0].mxu0
        %v888 = vadd.f32 0.0, %v887
        %v889 = vpop.f32.mrb[0].mxu0
        %v890 = vpop.f32.mrb[0].mxu0
        %v891 = vadd.f32 0.0, %v890
        %v892 = vpop.f32.mrb[0].mxu0
        %893 = vdwg.mxu0
        %v896 = vunpack.c.l.b16 %v368
        %v897 = vunpack.c.l.b16 %v369
        %v898 = vpack.c.b16 %v897, %v896
        %v901 = vsel %vm606, %v841, 0
        %903 = vmatprep.subr.bf16.mxu0 0
        %904 = vmatpush1.bf16.msra.mxu0 %v898
        %905 = vmatprep.subr.bf16.mxu0 0
        %906 = vmatpush1.bf16.msra.mxu0 0
        %907 = vmatprep.subr.bf16.mxu0 0
        %908 = vmatpush1.bf16.msra.mxu0 0
        %909 = vmatprep.subr.bf16.mxu0 0
        %910 = vmatpush1.bf16.msra.mxu0 0
        %911 = vmatprep.subr.bf16.mxu0 0
        %912 = vmatpush1.bf16.msra.mxu0 0
        %913 = vmatprep.subr.bf16.mxu0 0
        %914 = vmatpush1.bf16.msra.mxu0 0
        %915 = vmatprep.subr.bf16.mxu0 0
        %916 = vmatpush1.bf16.msra.mxu0 0
        %917 = vmatprep.subr.bf16.mxu0 0
        %918 = vmatpush1.bf16.msra.mxu0 0
        %919 = vmatprep.subr.bf16.mxu0 0
        %920 = vmatpush1.bf16.msra.mxu0 0
        %921 = vmatprep.subr.bf16.mxu0 0
        %922 = vmatpush1.bf16.msra.mxu0 0
        %923 = vmatprep.subr.bf16.mxu0 0
        %924 = vmatpush1.bf16.msra.mxu0 0
        %925 = vmatprep.subr.bf16.mxu0 0
        %926 = vmatpush1.bf16.msra.mxu0 0
        %927 = vmatprep.subr.bf16.mxu0 0
        %928 = vmatpush1.bf16.msra.mxu0 0
        %929 = vmatprep.subr.bf16.mxu0 0
        %930 = vmatpush1.bf16.msra.mxu0 0
        %931 = vmatprep.subr.bf16.mxu0 0
        %932 = vmatpush1.bf16.msra.mxu0 0
        %933 = vmatprep.subr.bf16.mxu0 0
        %934 = vmatpush1.bf16.msra.mxu0 0
        %935 = vmatprep.mubr.bf16.mxu0 0
        %936 = vmatmul.mubr.bf16.gmra.mrb[0].mxu0 %v901
        %v937 = vpop.f32.mrb[0].mxu0
        %v938 = vadd.f32 0.0, %v937
        %v939 = vpop.f32.mrb[0].mxu0
        %v940 = vpop.f32.mrb[0].mxu0
        %v941 = vadd.f32 0.0, %v940
        %v942 = vpop.f32.mrb[0].mxu0
        %943 = vdwg.mxu0
        %v946 = vunpack.c.l.b16 %v370
        %v947 = vunpack.c.l.b16 %v371
        %v948 = vpack.c.b16 %v947, %v946
        %v951 = vsel %vm606, %v842, 0
        %953 = vmatprep.subr.bf16.mxu0 0
        %954 = vmatpush1.bf16.msra.mxu0 %v948
        %955 = vmatprep.subr.bf16.mxu0 0
        %956 = vmatpush1.bf16.msra.mxu0 0
        %957 = vmatprep.subr.bf16.mxu0 0
        %958 = vmatpush1.bf16.msra.mxu0 0
        %959 = vmatprep.subr.bf16.mxu0 0
        %960 = vmatpush1.bf16.msra.mxu0 0
        %961 = vmatprep.subr.bf16.mxu0 0
        %962 = vmatpush1.bf16.msra.mxu0 0
        %963 = vmatprep.subr.bf16.mxu0 0
        %964 = vmatpush1.bf16.msra.mxu0 0
        %965 = vmatprep.subr.bf16.mxu0 0
        %966 = vmatpush1.bf16.msra.mxu0 0
        %967 = vmatprep.subr.bf16.mxu0 0
        %968 = vmatpush1.bf16.msra.mxu0 0
        %969 = vmatprep.subr.bf16.mxu0 0
        %970 = vmatpush1.bf16.msra.mxu0 0
        %971 = vmatprep.subr.bf16.mxu0 0
        %972 = vmatpush1.bf16.msra.mxu0 0
        %973 = vmatprep.subr.bf16.mxu0 0
        %974 = vmatpush1.bf16.msra.mxu0 0
        %975 = vmatprep.subr.bf16.mxu0 0
        %976 = vmatpush1.bf16.msra.mxu0 0
        %977 = vmatprep.subr.bf16.mxu0 0
        %978 = vmatpush1.bf16.msra.mxu0 0
        %979 = vmatprep.subr.bf16.mxu0 0
        %980 = vmatpush1.bf16.msra.mxu0 0
        %981 = vmatprep.subr.bf16.mxu0 0
        %982 = vmatpush1.bf16.msra.mxu0 0
        %983 = vmatprep.subr.bf16.mxu0 0
        %984 = vmatpush1.bf16.msra.mxu0 0
        %985 = vmatprep.mubr.bf16.mxu0 0
        %986 = vmatmul.mubr.bf16.gmra.mrb[0].mxu0 %v951
        %v987 = vpop.f32.mrb[0].mxu0
        %v988 = vadd.f32 0.0, %v987
        %v989 = vpop.f32.mrb[0].mxu0
        %v990 = vpop.f32.mrb[0].mxu0
        %v991 = vadd.f32 0.0, %v990
        %v992 = vpop.f32.mrb[0].mxu0
        %993 = vdwg.mxu0
        %v996 = vunpack.c.l.b16 %v372
        %v997 = vunpack.c.l.b16 %v373
        %v998 = vpack.c.b16 %v997, %v996
        %v1001 = vsel %vm606, %v843, 0
        %1003 = vmatprep.subr.bf16.mxu0 0
        %1004 = vmatpush1.bf16.msra.mxu0 %v998
        %1005 = vmatprep.subr.bf16.mxu0 0
        %1006 = vmatpush1.bf16.msra.mxu0 0
        %1007 = vmatprep.subr.bf16.mxu0 0
        %1008 = vmatpush1.bf16.msra.mxu0 0
        %1009 = vmatprep.subr.bf16.mxu0 0
        %1010 = vmatpush1.bf16.msra.mxu0 0
        %1011 = vmatprep.subr.bf16.mxu0 0
        %1012 = vmatpush1.bf16.msra.mxu0 0
        %1013 = vmatprep.subr.bf16.mxu0 0
        %1014 = vmatpush1.bf16.msra.mxu0 0
        %1015 = vmatprep.subr.bf16.mxu0 0
        %1016 = vmatpush1.bf16.msra.mxu0 0
        %1017 = vmatprep.subr.bf16.mxu0 0
        %1018 = vmatpush1.bf16.msra.mxu0 0
        %1019 = vmatprep.subr.bf16.mxu0 0
        %1020 = vmatpush1.bf16.msra.mxu0 0
        %1021 = vmatprep.subr.bf16.mxu0 0
        %1022 = vmatpush1.bf16.msra.mxu0 0
        %1023 = vmatprep.subr.bf16.mxu0 0
        %1024 = vmatpush1.bf16.msra.mxu0 0
        %1025 = vmatprep.subr.bf16.mxu0 0
        %1026 = vmatpush1.bf16.msra.mxu0 0
        %1027 = vmatprep.subr.bf16.mxu0 0
        %1028 = vmatpush1.bf16.msra.mxu0 0
        %1029 = vmatprep.subr.bf16.mxu0 0
        %1030 = vmatpush1.bf16.msra.mxu0 0
        %1031 = vmatprep.subr.bf16.mxu0 0
        %1032 = vmatpush1.bf16.msra.mxu0 0
        %1033 = vmatprep.subr.bf16.mxu0 0
        %1034 = vmatpush1.bf16.msra.mxu0 0
        %1035 = vmatprep.mubr.bf16.mxu0 0
        %1036 = vmatmul.mubr.bf16.gmra.mrb[0].mxu0 %v1001
        %v1037 = vpop.f32.mrb[0].mxu0
        %v1038 = vadd.f32 0.0, %v1037
        %v1039 = vpop.f32.mrb[0].mxu0
        %v1040 = vpop.f32.mrb[0].mxu0
        %v1041 = vadd.f32 0.0, %v1040
        %v1042 = vpop.f32.mrb[0].mxu0
        %1043 = vdwg.mxu0
        %v1044 = vadd.f32 %v832, %v888
        %v1045 = vadd.f32 %v833, %v891
        %v1046 = vadd.f32 %v834, %v938
        %v1047 = vadd.f32 %v835, %v941
        %v1048 = vadd.f32 %v836, %v988
        %v1049 = vadd.f32 %v837, %v991
        %v1050 = vadd.f32 %v838, %v1038
        %v1051 = vadd.f32 %v839, %v1041
        %1052 = vst.msk [vmem:[#allocation4] sm:$0xff] %vm379, %v1044
        %1053 = vst.msk [vmem:[#allocation4 + $0x8] sm:$0xff] %vm379, %v1045
        %1054 = vst.msk [vmem:[#allocation4 + $0x10] sm:$0xff] %vm379, %v1046
        %1055 = vst.msk [vmem:[#allocation4 + $0x18] sm:$0xff] %vm379, %v1047
        %1056 = vst.msk [vmem:[#allocation4 + $0x20] sm:$0xff] %vm379, %v1048
        %1057 = vst.msk [vmem:[#allocation4 + $0x28] sm:$0xff] %vm379, %v1049
        %1058 = vst.msk [vmem:[#allocation4 + $0x30] sm:$0xff] %vm379, %v1050
        %1059 = vst.msk [vmem:[#allocation4 + $0x38] sm:$0xff] %vm379, %v1051
        %1060 = vst.msk [vmem:[#allocation2] sm:$0xff] %vm775, %v631
        %1061 = vst.msk [vmem:[#allocation2 + $0x8] sm:$0xff] %vm775, %v632
        %1062 = vst.msk [vmem:[#allocation2 + $0x10] sm:$0xff] %vm775, %v633
        %1063 = vst.msk [vmem:[#allocation2 + $0x18] sm:$0xff] %vm775, %v634
        %1064 = vst.msk [vmem:[#allocation2 + $0x20] sm:$0xff] %vm775, %v635
        %1065 = vst.msk [vmem:[#allocation2 + $0x28] sm:$0xff] %vm775, %v636
        %1066 = vst.msk [vmem:[#allocation2 + $0x30] sm:$0xff] %vm775, %v637
        %1067 = vst.msk [vmem:[#allocation2 + $0x38] sm:$0xff] %vm775, %v638
        // Predicated region
        $region49: #{tpu_custom_call.1} parent=31 // pred_check
          %p1068 = pneg %p301
        $region50: #{tpu_custom_call.1} parent=31 // pred_check_branch
          %1070 = sbr.rel (%p1068) target = $region52
        $region51: #{tpu_custom_call.1} parent=31 // pred_region
          %v1071 = vld [vmem:[#allocation4] sm:$0xff]
          %v1072 = vld [vmem:[#allocation4 + $0x8] sm:$0xff]
          %v1073 = vld [vmem:[#allocation4 + $0x10] sm:$0xff]
          %v1074 = vld [vmem:[#allocation4 + $0x18] sm:$0xff]
          %v1075 = vld [vmem:[#allocation4 + $0x20] sm:$0xff]
          %v1076 = vld [vmem:[#allocation4 + $0x28] sm:$0xff]
          %v1077 = vld [vmem:[#allocation4 + $0x30] sm:$0xff]
          %v1078 = vld [vmem:[#allocation4 + $0x38] sm:$0xff]
          %v1079 = vld [vmem:[#allocation3] sm:$0xff]
          %v1080 = vld [vmem:[#allocation3 + $0x8] sm:$0xff]
          %v1081 = vld [vmem:[#allocation3 + $0x10] sm:$0xff]
          %v1082 = vld [vmem:[#allocation3 + $0x18] sm:$0xff]
          %v1083 = vld [vmem:[#allocation3 + $0x20] sm:$0xff]
          %v1084 = vld [vmem:[#allocation3 + $0x28] sm:$0xff]
          %v1085 = vld [vmem:[#allocation3 + $0x30] sm:$0xff]
          %v1086 = vld [vmem:[#allocation3 + $0x38] sm:$0xff]
          %1088 = vset.pattern.permute.xlu0 0
          %1089 = vperm.xlu0 %1088, %v1079
          %v1090 = vpop.permute.xlu0 %1089
          %1093 = vset.pattern.permute.xlu0 0
          %1094 = vperm.xlu0 %1093, %v1080
          %v1095 = vpop.permute.xlu0 %1094
          %1098 = vset.pattern.permute.xlu0 0
          %1099 = vperm.xlu0 %1098, %v1081
          %v1100 = vpop.permute.xlu0 %1099
          %1103 = vset.pattern.permute.xlu0 0
          %1104 = vperm.xlu0 %1103, %v1082
          %v1105 = vpop.permute.xlu0 %1104
          %1108 = vset.pattern.permute.xlu0 0
          %1109 = vperm.xlu0 %1108, %v1083
          %v1110 = vpop.permute.xlu0 %1109
          %1113 = vset.pattern.permute.xlu0 0
          %1114 = vperm.xlu0 %1113, %v1084
          %v1115 = vpop.permute.xlu0 %1114
          %1118 = vset.pattern.permute.xlu0 0
          %1119 = vperm.xlu0 %1118, %v1085
          %v1120 = vpop.permute.xlu0 %1119
          %1123 = vset.pattern.permute.xlu0 0
          %1124 = vperm.xlu0 %1123, %v1086
          %v1125 = vpop.permute.xlu0 %1124
          %v1127 = vrcp.pop %v1090
          %v1128 = vmul.f32 %v1071, %v1127
          %v1129 = vrcp.pop %v1095
          %v1130 = vmul.f32 %v1072, %v1129
          %v1131 = vrcp.pop %v1100
          %v1132 = vmul.f32 %v1073, %v1131
          %v1133 = vrcp.pop %v1105
          %v1134 = vmul.f32 %v1074, %v1133
          %v1135 = vrcp.pop %v1110
          %v1136 = vmul.f32 %v1075, %v1135
          %v1137 = vrcp.pop %v1115
          %v1138 = vmul.f32 %v1076, %v1137
          %v1139 = vrcp.pop %v1120
          %v1140 = vmul.f32 %v1077, %v1139
          %v1141 = vrcp.pop %v1125
          %v1142 = vmul.f32 %v1078, %v1141
          %1143 = vst.msk [vmem:[%s293] sm:$0xff] %vm379, %v1128
          %1144 = vst.msk [vmem:[%s293 + $0x8] sm:$0xff] %vm379, %v1130
          %1145 = vst.msk [vmem:[%s293 + $0x10] sm:$0xff] %vm379, %v1132
          %1146 = vst.msk [vmem:[%s293 + $0x18] sm:$0xff] %vm379, %v1134
          %1147 = vst.msk [vmem:[%s293 + $0x20] sm:$0xff] %vm379, %v1136
          %1148 = vst.msk [vmem:[%s293 + $0x28] sm:$0xff] %vm379, %v1138
          %1149 = vst.msk [vmem:[%s293 + $0x30] sm:$0xff] %vm379, %v1140
          %1150 = vst.msk [vmem:[%s293 + $0x38] sm:$0xff] %vm379, %v1142
        $region52: #{tpu_custom_call.1} parent=31 // pred_fallthru
          _
        %s1151 = sand.u32 %s132, 1
        %s1152 = scalar_lea.sflag [#allocation7], %s1151
        %s1153 = sand.u32 %s132, 1
        %s1154 = smul.addr %s1153, 64
        %s1155 = scalar_lea.vmem [#allocation11], %s1154
        // Predicated region
        $region53: #{tpu_custom_call.1} parent=31 // pred_check
          %p1156 = pneg %p142
        $region54: #{tpu_custom_call.1} parent=31 // pred_check_branch
          %1158 = sbr.rel (%p1156) target = $region56
        $region55: #{tpu_custom_call.1} parent=31 // pred_region
          %s1159 = smul.u32 4, %s28
          %s1160 = smul.u32 2, %s29
          %s1162 = ssub.s32 1024, 1024
          %1163 = vsyncadd %s1152, %s1162
          %s1164 = smul.addr %s1159, 2
          %s1165 = sadd.s32 %s1160, %s1164
          %s1166 = smul.addr %s1165, 128
          %s1167 = scalar_lea.hbm %s3, %s1166
          %s1168 = sshll.u32 %s1155, 4
          %s1169 = int_to_ptr.vmem [resolvable:$true] %s1168
          %1174 = dma.vmem_to_hbm [thread:$0]  %s1169, 1024, %s1167, %s1152, 128, 128, 8
        $region56: #{tpu_custom_call.1} parent=31 // pred_fallthru
          _
      $region32: #{tpu_custom_call.1} parent=5 // pred_fallthru
        _
      %p1175 = scmp.le.s32.totalorder 2, %s18
      // Predicated region
      $region57: #{tpu_custom_call.1} parent=5 // pred_check
        %p1176 = pneg %p1175
      $region58: #{tpu_custom_call.1} parent=5 // pred_check_branch
        %1178 = sbr.rel (%p1176) target = $region60
      $region59: #{tpu_custom_call.1} parent=5 // pred_region
        %s1179 = ssub.s32 %s18, 2
        // Predicated region
        $region61: #{tpu_custom_call.1} parent=59 // pred_check
          %p1180 = pneg %p148
        $region62: #{tpu_custom_call.1} parent=59 // pred_check_branch
          %1182 = sbr.rel (%p1180) target = $region64
        $region63: #{tpu_custom_call.1} parent=59 // pred_region
          %s1183 = sand.u32 %s133, 1
          %s1184 = scalar_lea.sflag [#allocation7], %s1183
          %s1185 = sand.u32 %s133, 1
          %s1186 = smul.addr %s1185, 64
          %s1187 = scalar_lea.vmem [#allocation11], %s1186
          %1188 = dma.done %s1184, 1024
        $region64: #{tpu_custom_call.1} parent=59 // pred_fallthru
          _
      $region60: #{tpu_custom_call.1} parent=5 // pred_fallthru
        _
    $region6: #{tpu_custom_call.1} parent=1 // loop_footer
      %s22 = sadd.s32 1, %s18
    $region7: #{tpu_custom_call.1} parent=1 // loop_footer_branch
      %17 = sbr.rel target = $region3
    $region8: #{tpu_custom_call.1} parent=1 // loop_exit
      _
    %1189 = vsyncpa [#allocation6], 1
    %s1190 = scalar_lea.sflag [#allocation6], 1
    %1191 = vsyncpa %s1190, 1
    %1192 = vsyncpa [#allocation9], 1
    %s1193 = scalar_lea.sflag [#allocation9], 1
    %1194 = vsyncpa %s1193, 1
    %1195 = vsyncpa [#allocation7], 1
    %s1196 = scalar_lea.sflag [#allocation7], 1
    %1197 = vsyncpa %s1196, 1

</llo_original>
